<compile_context>
chip_gen: v7x
topology: tpu7x:2x2x1
jax: 0.10.0
libtpu: 0.0.40
codegen_flags: <defaults>
</compile_context>

<pallas_src>
import functools

import jax
import jax.numpy as jnp
import numpy as np
from jax.experimental import pallas as pl
from jax.experimental.pallas import tpu as pltpu


def bev_spatial_shape(pillar_size, point_cloud_range):
    W = round((point_cloud_range[3] - point_cloud_range[0]) / pillar_size[0])
    H = round((point_cloud_range[4] - point_cloud_range[1]) / pillar_size[1])
    return int(H), int(W)


def _group_kernel(in_ref, out_ref, *, sx, sy, x_offset, y_offset):
    """Channel-major point grouping (points on the 128-lane axis).

    in_ref  : (2+C, TN)  rows = [x_idx, y_idx, feat_0 (abs x), feat_1 (abs y), ...]
    out_ref : (C+2, TN)  rows = [dx, dy, features...]
    """
    x = in_ref[...]                                   # (2+C, TN), one DMA'd block
    # dx/dy against the pillar center; grid indices arrive pre-cast to float.
    out_ref[0:1, :] = x[2:3, :] - (x[0:1, :] * sx + x_offset)
    out_ref[1:2, :] = x[3:4, :] - (x[1:2, :] * sy + y_offset)
    # Pass-through of the original features (sub-row store, no sublane concat).
    out_ref[2:, :] = x[2:, :]


def _grouped_features(comb_cm, sx, sy, x_offset, y_offset, tile_n):
    """Run the Pallas grouping kernel over the combined channel-major input."""
    CF, Np = comb_cm.shape                            # CF = 2 + C
    C = CF - 2
    kernel = functools.partial(_group_kernel, sx=sx, sy=sy,
                               x_offset=x_offset, y_offset=y_offset)

    # Explicit scoped-VMEM budget: double-buffered input + output blocks with
    # margin; at least v5e's 16 MiB default, capped under v7x's 64 MiB VMEM.
    in_block = CF * tile_n * comb_cm.dtype.itemsize
    out_block = (C + 2) * tile_n * comb_cm.dtype.itemsize
    needed = 2 * 2 * (in_block + out_block) + (4 << 20)
    vmem_limit = int(min(48 << 20, max(needed, 16 << 20)))

    return pl.pallas_call(
        kernel,
        out_shape=jax.ShapeDtypeStruct((C + 2, Np), comb_cm.dtype),
        grid_spec=pltpu.PrefetchScalarGridSpec(
            num_scalar_prefetch=0,
            grid=(Np // tile_n,),
            in_specs=[pl.BlockSpec((CF, tile_n), lambda i: (0, i))],
            out_specs=pl.BlockSpec((C + 2, tile_n), lambda i: (0, i))),
        compiler_params=pltpu.CompilerParams(
            dimension_semantics=("parallel",),
            vmem_limit_bytes=vmem_limit),
    )(comb_cm)


@functools.partial(jax.jit,
                   static_argnames=("pillar_size", "point_cloud_range",
                                    "tile_n"))
def _pillar_group_core(pts_xy, pts_batch_cnt, pts_features, pillar_size,
                       point_cloud_range, tile_n):
    """All shape-static work (jittable). No host syncs."""
    H, W = bev_spatial_shape(pillar_size, point_cloud_range)
    x_offset = pillar_size[0] / 2.0 + point_cloud_range[0]
    y_offset = pillar_size[1] / 2.0 + point_cloud_range[1]

    N, C = pts_features.shape
    B = pts_batch_cnt.shape[0]
    HW = H * W
    BHW = B * HW

    # ---- per-point pillar cell (O(N) bookkeeping, plain JAX) ----
    # NOTE: total_repeat_length=N assumes sum(pts_batch_cnt) == N (as in the
    # CUDA op); mismatched counts would silently mis-assign batch ids.
    batch_id = jnp.repeat(jnp.arange(B, dtype=jnp.int32), pts_batch_cnt,
                          total_repeat_length=N)
    x_idx = jnp.floor(pts_xy[:, 0] / pillar_size[0]).astype(jnp.int32)
    y_idx = jnp.floor(pts_xy[:, 1] / pillar_size[1]).astype(jnp.int32)
    valid = (x_idx >= 0) & (x_idx < W) & (y_idx >= 0) & (y_idx < H)
    flat = batch_id * HW + y_idx * W + x_idx                 # (N,)
    flat_oob = jnp.where(valid, flat, BHW)                   # OOB -> dropped

    # occupancy + rank of each occupied pillar (cumsum over the BEV grid)
    mask_flat = jnp.zeros((BHW,), jnp.bool_).at[flat_oob].set(True, mode="drop")
    mask_i32 = mask_flat.astype(jnp.int32)
    position_flat = jnp.cumsum(mask_i32) * mask_i32 - 1      # (BHW,), -1 empty
    num_pillars = jnp.sum(mask_i32)

    # per-point pillar rank: plain O(N) gather
    ranks = jnp.take(position_flat, jnp.where(valid, flat, 0))
    point_pillar_indices = jnp.where(valid, ranks, -1).astype(jnp.int32)

    # (b, y, x) of occupied pillars, scattered by rank.  All points of a pillar
    # write the same row, so duplicate indices are benign.  Capacity is a
    # static upper bound; the caller slices to the true out_dim.
    cap = min(N, BHW)
    pillar_rows = jnp.stack([batch_id, y_idx, x_idx], axis=1).astype(jnp.int32)
    pillar_table = jnp.zeros((cap, 3), jnp.int32).at[
        jnp.where(valid, ranks, cap)].set(pillar_rows, mode="drop")

    # ---- tile sizing (all trace-time Python ints) ----
    tile_n = max(128, (int(tile_n) // 128) * 128)
    n128 = pl.cdiv(N, 128) * 128
    # Keep the 1-D grid >= 4 steps when possible so v7x's 2 TensorCores both
    # get work and the double-buffered pipeline has steps to overlap.
    grid4_cap = ((n128 // 4) // 128) * 128
    if grid4_cap >= 128:
        tile_n = min(tile_n, grid4_cap)
    tile_n = min(tile_n, n128)
    Np = pl.cdiv(N, tile_n) * tile_n
    pad = Np - N

    # ---- single channel-major input stream for the Pallas hot path ----
    dt = pts_features.dtype
    grid_f = jnp.stack([x_idx, y_idx], axis=0).astype(dt)     # (2, N)
    comb = jnp.concatenate([grid_f, pts_features.T], axis=0)  # (2+C, N)
    if pad:
        comb = jnp.pad(comb, ((0, 0), (0, pad)))              # (2+C, Np)

    out_cm = _grouped_features(comb,
                               float(pillar_size[0]), float(pillar_size[1]),
                               float(x_offset), float(y_offset), tile_n)
    # TODO(synk): row-major (N, C+2) output is required by the module API; a
    # channel-major consumer should take out_cm[:, :N] directly instead.
    point_pillar_features = out_cm[:, :N].T                   # (N, C+2)

    return (pillar_table, num_pillars, point_pillar_indices,
            point_pillar_features)


def pillar_query_and_group(pts_xy, pts_batch_cnt, pts_features,
                           pillar_size, point_cloud_range, *, tile_n=32768):
    pillar_size = (tuple(float(p) for p in pillar_size)
                   if isinstance(pillar_size, (tuple, list))
                   else (float(pillar_size), float(pillar_size)))
    point_cloud_range = tuple(float(v) for v in point_cloud_range)

    (pillar_table, num_pillars, point_pillar_indices,
     point_pillar_features) = _pillar_group_core(
        pts_xy, pts_batch_cnt, pts_features, pillar_size, point_cloud_range,
        int(tile_n))

    # Single, deferred host sync for the data-dependent pillar count; the
    # Pallas kernel and all per-point work were already dispatched above.
    # TODO(synk): out_dim is data dependent, so this final slice cannot live
    # inside jit; per-point outputs keep length N (rank -1 marks out-of-range
    # points) instead of the CUDA op's compacted L-length outputs.
    out_dim = int(num_pillars)
    pillar_indices = pillar_table[:out_dim]
    return pillar_indices, point_pillar_indices, point_pillar_features


if __name__ == "__main__":
    key = jax.random.PRNGKey(0)

    # Small deterministic example consistent with the module:
    pillar_size = (0.4, 0.4)
    point_cloud_range = (0.0, -3.2, -3.0, 6.4, 3.2, 1.0)   # -> H = W = 16
    B = 2
    counts = jnp.array([128, 128], dtype=jnp.int32)
    N = int(counts.sum())
    C = 4

    kx, kf = jax.random.split(key)
    lo = jnp.array([point_cloud_range[0], point_cloud_range[1]], jnp.float32)
    hi = jnp.array([point_cloud_range[3], point_cloud_range[4]], jnp.float32)
    # absolute xy strictly inside the range
    xy_abs = lo + jax.random.uniform(kx, (N, 2), dtype=jnp.float32) * (hi - lo) * 0.98
    extra = jax.random.normal(kf, (N, C - 2), dtype=jnp.float32)

    pts_xy = xy_abs - lo                                     # relative coordinates
    pts_features = jnp.concatenate([xy_abs, extra], axis=1)  # (N, C)

    pillar_indices, point_pillar_indices, point_pillar_features = jax.block_until_ready(
        pillar_query_and_group(pts_xy, counts, pts_features,
                               pillar_size, point_cloud_range))

    # ---- numpy reference check of the kernel semantics ----
    H, W = bev_spatial_shape(pillar_size, point_cloud_range)
    xo = pillar_size[0] / 2.0 + point_cloud_range[0]
    yo = pillar_size[1] / 2.0 + point_cloud_range[1]
    np_xy = np.asarray(pts_xy)
    np_feat = np.asarray(pts_features)
    bid = np.repeat(np.arange(B), np.asarray(counts))
    xi = np.floor(np_xy[:, 0] / pillar_size[0]).astype(np.int32)
    yi = np.floor(np_xy[:, 1] / pillar_size[1]).astype(np.int32)
    flat = bid * H * W + yi * W + xi
    mask = np.zeros(B * H * W, dtype=np.int32)
    mask[flat] = 1
    pos = np.cumsum(mask) * mask - 1
    ref_ppidx = pos[flat]
    ref_feat = np.concatenate(
        [np_feat[:, :1] - (xi[:, None] * pillar_size[0] + xo),
         np_feat[:, 1:2] - (yi[:, None] * pillar_size[1] + yo),
         np_feat], axis=1)
    occ = np.nonzero(mask)[0]
    ref_pillars = np.stack([occ // (H * W), (occ % (H * W)) // W, occ % W],
                           axis=1).astype(np.int32)

    assert np.array_equal(np.asarray(point_pillar_indices), ref_ppidx)
    assert np.allclose(np.asarray(point_pillar_features), ref_feat, atol=1e-5)
    assert np.array_equal(np.asarray(pillar_indices), ref_pillars)

    print("KERNEL_OK")
</pallas_src>

<mosaic_0001>
module attributes {stable_mosaic.version = 11 : i64} {
  func.func @_group_kernel(%arg0: i32, %arg1: memref<6x256xf32, #tpu.memory_space<vmem>>, %arg2: memref<6x256xf32, #tpu.memory_space<vmem>>) attributes {dimension_semantics = [#tpu.dimension_semantics<parallel>], iteration_bounds = array<i64: 1>, scalar_prefetch = 0 : i64, scratch_operands = 0 : i64, tpu.core_type = #tpu.core_type<tc>, window_params = [{transform_indices = @transform_0, window_bounds = array<i64: 6, 256>}, {transform_indices = @transform_1, window_bounds = array<i64: 6, 256>}]} {
    %c0 = arith.constant 0 : index
    %c0_0 = arith.constant 0 : index
    %0 = vector.load %arg1[%c0, %c0_0] : memref<6x256xf32, #tpu.memory_space<vmem>>, vector<6x256xf32>
    %1 = vector.extract_strided_slice %0 {offsets = [2, 0], sizes = [1, 256], strides = [1, 1]} : vector<6x256xf32> to vector<1x256xf32>
    %2 = vector.extract_strided_slice %0 {offsets = [0, 0], sizes = [1, 256], strides = [1, 1]} : vector<6x256xf32> to vector<1x256xf32>
    %cst = arith.constant 4.000000e-01 : f32
    %3 = vector.broadcast %cst : f32 to vector<1x256xf32>
    %4 = arith.mulf %2, %3 : vector<1x256xf32>
    %cst_1 = arith.constant 2.000000e-01 : f32
    %5 = vector.broadcast %cst_1 : f32 to vector<1x256xf32>
    %6 = arith.addf %4, %5 : vector<1x256xf32>
    %7 = arith.subf %1, %6 : vector<1x256xf32>
    %c0_2 = arith.constant 0 : index
    %c0_3 = arith.constant 0 : index
    %8 = vector.load %arg2[%c0_2, %c0_3] : memref<6x256xf32, #tpu.memory_space<vmem>>, vector<1x256xf32>
    tpu.vector_store %arg2[%c0_2, %c0_3], %7 {strides = array<i32>} : memref<6x256xf32, #tpu.memory_space<vmem>>, vector<1x256xf32>,
    %9 = vector.extract_strided_slice %0 {offsets = [3, 0], sizes = [1, 256], strides = [1, 1]} : vector<6x256xf32> to vector<1x256xf32>
    %10 = vector.extract_strided_slice %0 {offsets = [1, 0], sizes = [1, 256], strides = [1, 1]} : vector<6x256xf32> to vector<1x256xf32>
    %cst_4 = arith.constant 4.000000e-01 : f32
    %11 = vector.broadcast %cst_4 : f32 to vector<1x256xf32>
    %12 = arith.mulf %10, %11 : vector<1x256xf32>
    %cst_5 = arith.constant -3.000000e+00 : f32
    %13 = vector.broadcast %cst_5 : f32 to vector<1x256xf32>
    %14 = arith.addf %12, %13 : vector<1x256xf32>
    %15 = arith.subf %9, %14 : vector<1x256xf32>
    %c1 = arith.constant 1 : index
    %c0_6 = arith.constant 0 : index
    %16 = vector.load %arg2[%c1, %c0_6] : memref<6x256xf32, #tpu.memory_space<vmem>>, vector<1x256xf32>
    tpu.vector_store %arg2[%c1, %c0_6], %15 {strides = array<i32>} : memref<6x256xf32, #tpu.memory_space<vmem>>, vector<1x256xf32>,
    %17 = vector.extract_strided_slice %0 {offsets = [2, 0], sizes = [4, 256], strides = [1, 1]} : vector<6x256xf32> to vector<4x256xf32>
    %c2 = arith.constant 2 : index
    %c0_7 = arith.constant 0 : index
    %18 = vector.load %arg2[%c2, %c0_7] : memref<6x256xf32, #tpu.memory_space<vmem>>, vector<4x256xf32>
    tpu.vector_store %arg2[%c2, %c0_7], %17 {strides = array<i32>} : memref<6x256xf32, #tpu.memory_space<vmem>>, vector<4x256xf32>,
    return
  }
  func.func @transform_0(%arg0: i32) -> (i32, i32) {
    %c0_i32 = arith.constant 0 : i32
    %c0_i32_0 = arith.constant 0 : i32
    return %c0_i32, %arg0 : i32, i32
  }
  func.func @transform_1(%arg0: i32) -> (i32, i32) {
    %c0_i32 = arith.constant 0 : i32
    %c0_i32_0 = arith.constant 0 : i32
    return %c0_i32, %arg0 : i32, i32
  }
}

</mosaic_0001>

<llo_original>
// kernel: _pillar_group_core.1
$region0: #{_pillar_group_core.1}
  #allocation0 [shape = 'u32[]', space=smem, size = 0x4, offset = 0x4, fixed_abs, tag = 'smem constant byte address 0x4 - core index']
  #allocation1 [shape = 'u32[144,128]{1,0:T(1,128)}', space=vmem, size = 0x12000, scoped, tag = 'internal scratch']
  %s0 = inlined_call_operand.vmem [shape: f32[6,256], index: 0, kind: input, shape index: {}]
  %s1 = inlined_call_operand.hbm [shape: f32[6,256], index: 1, kind: output, shape index: {}]
  %s2 = sld [smem:[#allocation0]]
  $region14: #{_pillar_group_core.1} parent=0
    _
  %s4 = ssub.s32 1, %s2
  %s5 = scalar_select 0, %s4, %s2
  $region1: #{_pillar_group_core.1} parent=0
    #allocation2 [shape = 'u8[8192]{0}', space=vmem, size = 0x2000, scoped, tag = 'output window, operand 0, single buffered']
    #allocation3 [shape = 's32[1]{0}', space=sflag, size = 0x4, scoped, tag = 'scoped memory for _pillar_group_core.1']
    %6 = vsyncpa [#allocation3], 0
    // Predicated region
    $region2: #{_pillar_group_core.1} parent=1 // pred_check
      _
    $region3: #{_pillar_group_core.1} parent=1 // pred_check_branch
      %8 = sbr.rel (0) target = $region5
    $region4: #{_pillar_group_core.1} parent=1 // pred_region
      _
    $region5: #{_pillar_group_core.1} parent=1 // pred_fallthru
      _
    %v9 = vld [vmem:[%s0] sm:$0x3f]
    %v10 = vld [vmem:[%s0 + $0x8] sm:$0x3f]
    %v11 = vmul.f32 %v9, 0.4
    %v12 = vmul.f32 %v10, 0.4
    %v13 = vadd.f32 %v11, 0.2
    %v14 = vadd.f32 %v12, 0.2
    %v17 = vrot.slane %v13, 6
    %v18 = vrot.slane %v14, 6
    %v21 = vsub.f32 %v9, %v17
    %v22 = vsub.f32 %v10, %v18
    %v25 = vcombine.low %v21, %v22
    %v27 = vunpack.c.l.s4 1966171168
    %v28 = vunpack.c.0.s8 %v27
    %v29 = vlaneseq
    %v30 = vshrl.u32 %v29, 7
    %v31 = vsub.s32 %v28, %v30
    %v32 = vrot.slane %v25, %v31
    %v34 = vunpack.c.l.s4 1966171168
    %v35 = vunpack.c.0.s8 %v34
    %v36 = vlaneseq
    %v37 = vshrl.u32 %v36, 7
    %v38 = vsub.s32 %v35, %v37
    %v39 = vrot.slane %v32, %v38
    %v40 = vcombine.high %v39, %v39
    %v42 = vlaneseq
    %vm43 = vcmp.ge.s32.totalorder %v42, 0
    %vm44 = vcmp.lt.s32.totalorder %v42, 256
    %vm45 = vmand %vm43, %vm44
    %46 = vst.msk [vmem:[#allocation2] ss:$8 sm:$0x3] %vm45, %v40
    %47 = vst.msk [vmem:[#allocation2] ss:$8 sm:$0x0] %vm45, %v40
    %v48 = vadd.f32 %v11, -3.0
    %v49 = vadd.f32 %v12, -3.0
    %v52 = vrot.slane %v48, 6
    %v53 = vrot.slane %v49, 6
    %v56 = vsub.f32 %v9, %v52
    %v57 = vsub.f32 %v10, %v53
    %v60 = vcombine.low %v56, %v57
    %v62 = vunpack.c.l.s4 1966171168
    %v63 = vunpack.c.0.s8 %v62
    %v64 = vlaneseq
    %v65 = vshrl.u32 %v64, 7
    %v66 = vsub.s32 %v63, %v65
    %v67 = vrot.slane %v60, %v66
    %v68 = vcombine.high %v67, %v67
    %v70 = vunpack.c.l.s4 1966171168
    %v71 = vunpack.c.0.s8 %v70
    %v72 = vlaneseq
    %v73 = vshrl.u32 %v72, 7
    %v74 = vsub.s32 %v71, %v73
    %v75 = vrot.slane %v68, %v74
    %v76 = vcombine.high %v75, %v75
    %s78 = scalar_lea.vmem [#allocation2], 1
    %79 = vst.msk [vmem:[%s78] ss:$8 sm:$0x3] %vm45, %v76
    %80 = vst.msk [vmem:[%s78] ss:$8 sm:$0x0] %vm45, %v76
    %81 = vst [vmem:[#allocation2] sm:$0x3c] %v9
    %82 = vst [vmem:[#allocation2 + $0x8] sm:$0x3c] %v10
    // Predicated region
    $region6: #{_pillar_group_core.1} parent=1 // pred_check
      _
    $region7: #{_pillar_group_core.1} parent=1 // pred_check_branch
      %84 = sbr.rel (0) target = $region9
    $region8: #{_pillar_group_core.1} parent=1 // pred_region
      %s86 = ssub.s32 256, 256
      %87 = vsyncadd [#allocation3], %s86
      %s89 = sshll.u32 [#allocation2], 4
      %s90 = int_to_ptr.vmem [resolvable:$true] %s89
      %92 = dma.vmem_to_hbm [thread:$0]  %s90, 256, %s1, [#allocation3]
    $region9: #{_pillar_group_core.1} parent=1 // pred_fallthru
      _
    // Predicated region
    $region10: #{_pillar_group_core.1} parent=1 // pred_check
      _
    $region11: #{_pillar_group_core.1} parent=1 // pred_check_branch
      %94 = sbr.rel (0) target = $region13
    $region12: #{_pillar_group_core.1} parent=1 // pred_region
      %95 = dma.done [#allocation3], 256
    $region13: #{_pillar_group_core.1} parent=1 // pred_fallthru
      _
    %96 = vsyncpa [#allocation3], 1

</llo_original>
